<compile_context>
chip_gen: v7x
topology: tpu7x:2x2x1
jax: 0.10.0
libtpu: 0.0.40
codegen_flags: <defaults>
</compile_context>

<pallas_src>
import functools

import jax
import jax.numpy as jnp
from jax import lax
from jax.experimental import pallas as pl
from jax.experimental.pallas import tpu as pltpu


def _margin_loss_kernel(logits_ref, labels_ref, out_ref, *, kappa, targeted):
    """One batch tile.

    logits_ref: (TB, C) input-dtype VMEM
    labels_ref: (TB, 1) i32 VMEM
    out_ref:    (TB, 1) f32 VMEM
    """
    logits = logits_ref[...].astype(jnp.float32)   # in-register upcast (bf16 path)
    labels = labels_ref[...]                       # (TB, 1)
    tb, c = logits.shape

    col = lax.broadcasted_iota(jnp.int32, (tb, c), 1)   # class index per lane
    label_mask = col == labels                          # (TB, C) via row broadcast
    neg_inf = jnp.float32(-jnp.inf)

    # correct = logits at the label column (labels are unique per row).
    correct = jnp.max(jnp.where(label_mask, logits, neg_inf),
                      axis=1, keepdims=True)             # (TB, 1)
    # Max over classes != label: one masked reduction replaces the whole
    # top-2 / argmax / second-max machinery (2 XLU reduces total instead of 5).
    max_incorrect = jnp.max(jnp.where(label_mask, neg_inf, logits),
                            axis=1, keepdims=True)       # (TB, 1)

    diff = (correct - max_incorrect) if targeted else (max_incorrect - correct)
    if kappa != float("inf"):   # static kwarg: skip the clamp entirely for default kappa
        diff = jnp.minimum(diff, jnp.float32(kappa))
    out_ref[...] = diff


def _round_up(x, m):
    return ((x + m - 1) // m) * m


def margin_loss(logits, labels, *, kappa=float("inf"), targeted=False, tile_b=None):
    """Pallas implementation of MarginLoss.forward(logits, labels)."""
    b, c = logits.shape
    labels2d = labels.reshape(-1, 1).astype(jnp.int32)

    itemsize = jnp.dtype(logits.dtype).itemsize
    if tile_b is None:
        # Largest row tile (<= 1024, multiple of 8) whose double-buffered logits
        # block stays within a conservative ~8 MiB budget. That fits every
        # generation's default scoped VMEM (v5e: 16 MiB, v6e/v7x: 32 MiB) with
        # headroom for the label/output buffers, and keeps the DMA pipeline alive.
        budget_bytes = 8 * 1024 * 1024
        by_vmem = budget_bytes // max(1, 2 * c * itemsize)
        tile_b = max(8, min(1024, (by_vmem // 8) * 8))
    tile_b = max(8, min(_round_up(b, 8), _round_up(tile_b, 8)))

    # cdiv-style grid: pad the batch to a multiple of tile_b. Padded rows are
    # computed on well-defined zeros and dropped by the [:b] slice below.
    b_pad = _round_up(b, tile_b)
    if b_pad != b:
        logits = jnp.pad(logits, ((0, b_pad - b), (0, 0)))
        labels2d = jnp.pad(labels2d, ((0, b_pad - b), (0, 0)))

    kernel = functools.partial(_margin_loss_kernel, kappa=kappa, targeted=targeted)

    out = pl.pallas_call(
        kernel,
        out_shape=jax.ShapeDtypeStruct((b_pad, 1), jnp.float32),
        grid_spec=pltpu.PrefetchScalarGridSpec(
            num_scalar_prefetch=0,
            grid=(b_pad // tile_b,),
            in_specs=[
                pl.BlockSpec((tile_b, c), lambda i: (i, 0)),
                pl.BlockSpec((tile_b, 1), lambda i: (i, 0)),
            ],
            out_specs=pl.BlockSpec((tile_b, 1), lambda i: (i, 0)),
        ),
        compiler_params=pltpu.CompilerParams(
            # Batch tiles are independent -> shard across both TCs on v7x.
            dimension_semantics=("parallel",),
            vmem_limit_bytes=32 * 1024 * 1024,
        ),
    )(logits, labels2d)

    return out[:b, 0]   # matches PyTorch .squeeze()


def _reference(logits, labels, kappa=float("inf"), targeted=False):
    """Pure-JAX reference mirroring the PyTorch top-2 formulation."""
    logits = logits.astype(jnp.float32)
    labels = labels.astype(jnp.int32)
    correct = jnp.take_along_axis(logits, labels[:, None], axis=1)
    top2_vals = -jnp.sort(-logits, axis=1)[:, :2]
    top_argmax = jnp.argmax(logits, axis=1)[:, None]
    top_max = top2_vals[:, :1]
    second_max = top2_vals[:, 1:2]
    eq = (top_argmax == labels[:, None]).astype(jnp.float32)
    max_incorrect = eq * second_max + (1.0 - eq) * top_max
    if targeted:
        return jnp.minimum(correct - max_incorrect, kappa)[:, 0]
    return jnp.minimum(max_incorrect - correct, kappa)[:, 0]


if __name__ == "__main__":
    key = jax.random.PRNGKey(0)
    k1, k2, k3, k4 = jax.random.split(key, 4)

    # 1) Default MarginLoss(): kappa=inf, targeted=False, f32.
    B, C = 8, 16
    logits = jax.random.normal(k1, (B, C), dtype=jnp.float32) * 3.0
    labels = jax.random.randint(k2, (B,), 0, C, dtype=jnp.int32)
    out = margin_loss(logits, labels)
    jax.block_until_ready(out)
    ref = _reference(logits, labels)
    assert out.shape == (B,)
    assert jnp.allclose(out, ref, atol=1e-5, rtol=1e-5), (out, ref)

    # 2) Non-multiple-of-tile batch (exercises the cdiv/pad path).
    B2 = 20
    logits2 = jax.random.normal(k3, (B2, C), dtype=jnp.float32) * 3.0
    labels2 = jax.random.randint(k4, (B2,), 0, C, dtype=jnp.int32)
    out2 = margin_loss(logits2, labels2)
    jax.block_until_ready(out2)
    ref2 = _reference(logits2, labels2)
    assert out2.shape == (B2,)
    assert jnp.allclose(out2, ref2, atol=1e-5, rtol=1e-5), (out2, ref2)

    # 3) Native bf16 read + targeted branch + finite kappa.
    logits_bf16 = logits.astype(jnp.bfloat16)
    out_t = margin_loss(logits_bf16, labels, kappa=5.0, targeted=True)
    jax.block_until_ready(out_t)
    ref_t = _reference(logits_bf16.astype(jnp.float32), labels, kappa=5.0, targeted=True)
    assert jnp.allclose(out_t, ref_t, atol=1e-5, rtol=1e-5), (out_t, ref_t)

    print("KERNEL_OK")
</pallas_src>

<mosaic_0001>
module attributes {stable_mosaic.version = 11 : i64} {
  func.func @_margin_loss_kernel(%arg0: i32, %arg1: memref<8x16xf32, #tpu.memory_space<vmem>>, %arg2: memref<8x1xi32, #tpu.memory_space<vmem>>, %arg3: memref<8x1xf32, #tpu.memory_space<vmem>>) attributes {dimension_semantics = [#tpu.dimension_semantics<parallel>], iteration_bounds = array<i64: 1>, scalar_prefetch = 0 : i64, scratch_operands = 0 : i64, tpu.core_type = #tpu.core_type<tc>, window_params = [{transform_indices = @transform_0, window_bounds = array<i64: 8, 16>}, {transform_indices = @transform_1, window_bounds = array<i64: 8, 1>}, {transform_indices = @transform_2, window_bounds = array<i64: 8, 1>}]} {
    %c0 = arith.constant 0 : index
    %c0_0 = arith.constant 0 : index
    %0 = vector.load %arg1[%c0, %c0_0] : memref<8x16xf32, #tpu.memory_space<vmem>>, vector<8x16xf32>
    %c0_1 = arith.constant 0 : index
    %c0_2 = arith.constant 0 : index
    %1 = vector.load %arg2[%c0_1, %c0_2] : memref<8x1xi32, #tpu.memory_space<vmem>>, vector<8x1xi32>
    %2 = tpu.iota {dimensions = array<i32: 1>} : vector<8x16xi32>
    %3 = vector.broadcast %1 : vector<8x1xi32> to vector<8x16xi32>
    %4 = arith.cmpi eq, %2, %3 : vector<8x16xi32>
    %cst = arith.constant 0xFF800000 : f32
    %5 = vector.broadcast %cst : f32 to vector<8x16xf32>
    %6 = arith.select %4, %0, %5 : vector<8x16xi1>, vector<8x16xf32>
    %cst_3 = arith.constant dense<0xFF800000> : vector<8xf32>
    %7 = vector.multi_reduction <maximumf>, %6, %cst_3 [1] : vector<8x16xf32> to vector<8xf32>
    %8 = vector.shape_cast %7 : vector<8xf32> to vector<8x1xf32>
    %cst_4 = arith.constant 0xFF800000 : f32
    %9 = vector.broadcast %cst_4 : f32 to vector<8x16xf32>
    %10 = arith.select %4, %9, %0 : vector<8x16xi1>, vector<8x16xf32>
    %cst_5 = arith.constant dense<0xFF800000> : vector<8xf32>
    %11 = vector.multi_reduction <maximumf>, %10, %cst_5 [1] : vector<8x16xf32> to vector<8xf32>
    %12 = vector.shape_cast %11 : vector<8xf32> to vector<8x1xf32>
    %13 = arith.subf %12, %8 : vector<8x1xf32>
    %c0_6 = arith.constant 0 : index
    %c0_7 = arith.constant 0 : index
    %14 = vector.load %arg3[%c0_6, %c0_7] : memref<8x1xf32, #tpu.memory_space<vmem>>, vector<8x1xf32>
    tpu.vector_store %arg3[%c0_6, %c0_7], %13 {strides = array<i32>} : memref<8x1xf32, #tpu.memory_space<vmem>>, vector<8x1xf32>,
    return
  }
  func.func @transform_0(%arg0: i32) -> (i32, i32) {
    %c0_i32 = arith.constant 0 : i32
    %c0_i32_0 = arith.constant 0 : i32
    return %arg0, %c0_i32 : i32, i32
  }
  func.func @transform_1(%arg0: i32) -> (i32, i32) {
    %c0_i32 = arith.constant 0 : i32
    %c0_i32_0 = arith.constant 0 : i32
    return %arg0, %c0_i32 : i32, i32
  }
  func.func @transform_2(%arg0: i32) -> (i32, i32) {
    %c0_i32 = arith.constant 0 : i32
    %c0_i32_0 = arith.constant 0 : i32
    return %arg0, %c0_i32 : i32, i32
  }
}

</mosaic_0001>

<llo_original>
// kernel: tpu_custom_call.1
$region0: #{tpu_custom_call.1}
  #allocation0 [shape = 'u32[]', space=smem, size = 0x4, offset = 0x4, fixed_abs, tag = 'smem constant byte address 0x4 - core index']
  #allocation1 [shape = 'u32[144,128]{1,0:T(1,128)}', space=vmem, size = 0x12000, scoped, tag = 'internal scratch']
  %s0 = inlined_call_operand.vmem [shape: f32[8,16], index: 0, kind: input, shape index: {}]
  %s1 = inlined_call_operand.vmem [shape: s32[8,1], index: 1, kind: input, shape index: {}]
  %s2 = inlined_call_operand.vmem [shape: f32[8,1], index: 2, kind: output, shape index: {}]
  %s3 = sld [smem:[#allocation0]]
  $region18: #{tpu_custom_call.1} parent=0
    _
  %s5 = ssub.s32 1, %s3
  %s6 = scalar_select 0, %s5, %s3
  // Predicated region
  $region2: #{tpu_custom_call.1} parent=0 // pred_check
    _
  $region3: #{tpu_custom_call.1} parent=0 // pred_check_branch
    %8 = sbr.rel (0) target = $region5
  $region4: #{tpu_custom_call.1} parent=0 // pred_region
    _
  $region5: #{tpu_custom_call.1} parent=0 // pred_fallthru
    _
  // Predicated region
  $region6: #{tpu_custom_call.1} parent=0 // pred_check
    _
  $region7: #{tpu_custom_call.1} parent=0 // pred_check_branch
    %10 = sbr.rel (0) target = $region9
  $region8: #{tpu_custom_call.1} parent=0 // pred_region
    _
  $region9: #{tpu_custom_call.1} parent=0 // pred_fallthru
    _
  %v11 = vld [vmem:[%s0] sm:$0xff]
  %v12 = vld [vmem:[%s1] sm:$0xff]
  %v13 = vlaneseq
  %v14 = vand.u32 %v13, 127
  %15 = vset.pattern.permute.xlu0 0
  %16 = vperm.xlu0 %15, %v12
  %v17 = vpop.permute.xlu0 %16
  %vm18 = vcmp.eq.s32.totalorder %v14, %v17
  %v19 = vsel %vm18, %v11, -inf
  %vm20 = vcmask 130048
  %v21 = vsel %vm20, %v19, -inf
  %22 = vmax.xlane.f32.xlu0 %v21
  %v23 = vpop.xlane.xlu0 %22
  %v24 = vsel %vm18, -inf, %v11
  %v25 = vsel %vm20, %v24, -inf
  %26 = vmax.xlane.f32.xlu0 %v25
  %v27 = vpop.xlane.xlu0 %26
  %v28 = vsub.f32 %v27, %v23
  %vm29 = vcmask 7168
  %30 = vst.msk [vmem:[%s2] sm:$0xff] %vm29, %v28
  // Predicated region
  $region10: #{tpu_custom_call.1} parent=0 // pred_check
    _
  $region11: #{tpu_custom_call.1} parent=0 // pred_check_branch
    %32 = sbr.rel (0) target = $region13
  $region12: #{tpu_custom_call.1} parent=0 // pred_region
    _
  $region13: #{tpu_custom_call.1} parent=0 // pred_fallthru
    _
  // Predicated region
  $region14: #{tpu_custom_call.1} parent=0 // pred_check
    _
  $region15: #{tpu_custom_call.1} parent=0 // pred_check_branch
    %34 = sbr.rel (0) target = $region17
  $region16: #{tpu_custom_call.1} parent=0 // pred_region
    _
  $region17: #{tpu_custom_call.1} parent=0 // pred_fallthru
    _

</llo_original>
